<compile_context>
chip_gen: v7x
topology: tpu7x:2x2x1
jax: 0.10.0
libtpu: 0.0.40
codegen_flags: <defaults>
</compile_context>

<pallas_src>
import jax
import jax.numpy as jnp
from jax import lax
from jax.experimental import pallas as pl
from jax.experimental.pallas import tpu as pltpu


def _conv_stats_kernel(xt_ref, w_ref, conv_ref, sum_ref, sq_ref, acc_s, acc_q):
    """Pass 1: strided conv (single matmul) + per-channel sum / sumsq.

    xt_ref:   (1, 3*C_in, TILE_L)  de-interleaved conv taps (NCW, taps stacked on sublanes)
    w_ref:    (C_out, 3*C_in)      flattened conv weight
    conv_ref: (1, C_out, TILE_L)   f32 conv output tile
    sum_ref:  (C_out, 1)           per-channel sum over (N, L_out)
    sq_ref:   (C_out, 1)           per-channel sum of squares
    acc_s, acc_q: VMEM scratch accumulators, persist across grid steps
    """
    first = jnp.logical_and(pl.program_id(0) == 0, pl.program_id(1) == 0)
    last = jnp.logical_and(pl.program_id(0) == pl.num_programs(0) - 1,
                           pl.program_id(1) == pl.num_programs(1) - 1)

    @pl.when(first)
    def _():
        acc_s[...] = jnp.zeros_like(acc_s)
        acc_q[...] = jnp.zeros_like(acc_q)

    # One MXU push: (C_out, 3*C_in) @ (3*C_in, TILE_L) -> (C_out, TILE_L),
    # K = 3*C_in (3x the per-tap K), f32 accumulation.
    y = jnp.dot(w_ref[...], xt_ref[0], preferred_element_type=jnp.float32)

    conv_ref[0] = y
    acc_s[...] += jnp.sum(y, axis=-1, keepdims=True)
    acc_q[...] += jnp.sum(y * y, axis=-1, keepdims=True)

    @pl.when(last)
    def _():
        sum_ref[...] = acc_s[...]
        sq_ref[...] = acc_q[...]


def _bn_relu_kernel(conv_ref, scale_ref, shift_ref, out_ref):
    """Pass 2: folded BN (single FMA per element) + ReLU.

    conv_ref:  (1, C_out, TILE_L) f32
    scale_ref: (C_out, 1)  = gamma * rsqrt(var + eps)
    shift_ref: (C_out, 1)  = beta - mean * scale
    """
    y = conv_ref[0] * scale_ref[...] + shift_ref[...]
    out_ref[0] = jnp.maximum(y, 0.0).astype(out_ref.dtype)


def _pick_tile_l(l_out, max_tile=1024):
    """Lane-axis tile: a multiple of 128 dividing L_out when possible, else full length."""
    if l_out % 128 != 0:
        return l_out
    t = min(max_tile, l_out)
    while l_out % t:
        t -= 128
    return t


def downsample(x, weight, gamma, beta, eps=1e-5):
    """Fused Conv1d(k=3, s=2, p=1, bias=False) + BatchNorm1d(train) + ReLU.

    x:      (N, C_in, L)      float32 (PyTorch NCW)
    weight: (C_out, C_in, 3)
    gamma, beta: (C_out,)
    Returns (N, C_out, L_out) with L_out = (L + 2 - 3)//2 + 1.
    """
    n, c_in, l = x.shape
    c_out = weight.shape[0]
    l_out = (l + 2 * 1 - 3) // 2 + 1

    # --- glue: de-interleave into conv taps (unit-stride, no full jnp.pad copy,
    # no layout transpose).  out[l] = W0 @ x[2l-1] + W1 @ x[2l] + W2 @ x[2l+1]
    # with x[-1] = x[L] = 0 (the padding=1 rows).
    x_even = x[:, :, 0::2][:, :, :l_out]                      # tap1: x[2l]
    x_odd = x[:, :, 1::2]                                     # x[2l+1]
    zcol = jnp.zeros((n, c_in, 1), x.dtype)
    odd_ext = jnp.concatenate([zcol, x_odd, zcol], axis=-1)
    tap0 = odd_ext[:, :, 0:l_out]                             # x[2l-1]
    tap2 = odd_ext[:, :, 1:1 + l_out]                         # x[2l+1]
    x_taps = jnp.concatenate([tap0, x_even, tap2], axis=1)    # (N, 3*C_in, L_out)

    # weight (C_out, C_in, 3) -> (C_out, 3*C_in), element [co, t*C_in + ci] = w[co, ci, t]
    w_flat = jnp.transpose(weight, (0, 2, 1)).reshape(c_out, 3 * c_in).astype(x.dtype)

    tile_l = _pick_tile_l(l_out)
    grid = (n, l_out // tile_l)
    vmem_kw = dict(vmem_limit_bytes=48 * 1024 * 1024)  # under v7x 64 MiB physical

    # --- pass 1: conv + per-channel stats.  Axes "arbitrary": the stats output
    # is a resident cross-tile accumulator (cannot be sharded across cores).
    conv, ch_sum, ch_sq = pl.pallas_call(
        _conv_stats_kernel,
        out_shape=(
            jax.ShapeDtypeStruct((n, c_out, l_out), jnp.float32),
            jax.ShapeDtypeStruct((c_out, 1), jnp.float32),
            jax.ShapeDtypeStruct((c_out, 1), jnp.float32),
        ),
        grid=grid,
        in_specs=[
            pl.BlockSpec((1, 3 * c_in, tile_l), lambda i, j: (i, 0, j)),
            pl.BlockSpec((c_out, 3 * c_in), lambda i, j: (0, 0)),
        ],
        out_specs=(
            pl.BlockSpec((1, c_out, tile_l), lambda i, j: (i, 0, j)),
            pl.BlockSpec((c_out, 1), lambda i, j: (0, 0)),
            pl.BlockSpec((c_out, 1), lambda i, j: (0, 0)),
        ),
        scratch_shapes=[pltpu.VMEM((c_out, 1), jnp.float32),
                        pltpu.VMEM((c_out, 1), jnp.float32)],
        compiler_params=pltpu.CompilerParams(
            dimension_semantics=("arbitrary", "arbitrary"), **vmem_kw),
    )(x_taps, w_flat)

    # --- tiny per-channel BN fold on (C_out,) vectors (XLA; negligible).
    count = jnp.float32(n * l_out)
    mean = ch_sum[:, 0] / count
    var = ch_sq[:, 0] / count - mean * mean            # biased batch variance
    inv = lax.rsqrt(var + jnp.float32(eps))
    g32 = gamma.astype(jnp.float32)
    scale = (g32 * inv).reshape(c_out, 1)
    shift = (beta.astype(jnp.float32) - mean * g32 * inv).reshape(c_out, 1)

    # --- pass 2: y = conv*scale + shift, ReLU.  "parallel" axes -> megacore on v7x.
    out = pl.pallas_call(
        _bn_relu_kernel,
        out_shape=jax.ShapeDtypeStruct((n, c_out, l_out), x.dtype),
        grid=grid,
        in_specs=[
            pl.BlockSpec((1, c_out, tile_l), lambda i, j: (i, 0, j)),
            pl.BlockSpec((c_out, 1), lambda i, j: (0, 0)),
            pl.BlockSpec((c_out, 1), lambda i, j: (0, 0)),
        ],
        out_specs=pl.BlockSpec((1, c_out, tile_l), lambda i, j: (i, 0, j)),
        compiler_params=pltpu.CompilerParams(
            dimension_semantics=("parallel", "parallel"), **vmem_kw),
    )(conv, scale, shift)

    return out


if __name__ == "__main__":
    # Small shapes consistent with the module: batch=2, in_planes=4, out_planes=8, length=16.
    N, C_IN, C_OUT, L = 2, 4, 8, 16

    key = jax.random.PRNGKey(0)
    k_x, k_w = jax.random.split(key)

    x = jax.random.normal(k_x, (N, C_IN, L), dtype=jnp.float32)

    # Deterministic PyTorch-style init: kaiming-uniform conv weight, BN gamma=1, beta=0.
    fan_in = C_IN * 3
    bound = 1.0 / (fan_in ** 0.5)
    weight = jax.random.uniform(k_w, (C_OUT, C_IN, 3), dtype=jnp.float32,
                                minval=-bound, maxval=bound)
    gamma = jnp.ones((C_OUT,), dtype=jnp.float32)
    beta = jnp.zeros((C_OUT,), dtype=jnp.float32)

    out = downsample(x, weight, gamma, beta)
    jax.block_until_ready(out)

    L_OUT = (L + 2 - 3) // 2 + 1
    assert out.shape == (N, C_OUT, L_OUT), out.shape

    # Sanity check against an XLA reference (conv + training-mode BN + ReLU).
    conv_ref = lax.conv_general_dilated(
        x, weight, window_strides=(2,), padding=((1, 1),),
        dimension_numbers=("NCH", "OIH", "NCH"),
        precision=lax.Precision.HIGHEST)
    m = conv_ref.mean(axis=(0, 2), keepdims=True)
    v = ((conv_ref - m) ** 2).mean(axis=(0, 2), keepdims=True)
    ref = jnp.maximum((conv_ref - m) * lax.rsqrt(v + 1e-5)
                      * gamma[None, :, None] + beta[None, :, None], 0.0)
    assert jnp.allclose(out, ref, atol=2e-2, rtol=2e-2), \
        float(jnp.max(jnp.abs(out - ref)))

    print("KERNEL_OK")
</pallas_src>

<mosaic_0001>
module attributes {stable_mosaic.version = 11 : i64} {
  func.func @_conv_stats_kernel(%arg0: i32, %arg1: i32, %arg2: memref<1x12x8xf32, #tpu.memory_space<vmem>>, %arg3: memref<8x12xf32, #tpu.memory_space<vmem>>, %arg4: memref<1x8x8xf32, #tpu.memory_space<vmem>>, %arg5: memref<8x1xf32, #tpu.memory_space<vmem>>, %arg6: memref<8x1xf32, #tpu.memory_space<vmem>>, %arg7: memref<8x1xf32, #tpu.memory_space<vmem>>, %arg8: memref<8x1xf32, #tpu.memory_space<vmem>>) attributes {dimension_semantics = [#tpu.dimension_semantics<arbitrary>, #tpu.dimension_semantics<arbitrary>], iteration_bounds = array<i64: 2, 1>, scalar_prefetch = 0 : i64, scratch_operands = 2 : i64, tpu.core_type = #tpu.core_type<tc>, window_params = [{transform_indices = @transform_0, window_bounds = array<i64: 1, 12, 8>}, {pipeline_mode = #tpu.pipeline_mode<synchronous>, transform_indices = @transform_1, window_bounds = array<i64: 8, 12>}, {transform_indices = @transform_2, window_bounds = array<i64: 1, 8, 8>}, {pipeline_mode = #tpu.pipeline_mode<synchronous>, transform_indices = @transform_3, window_bounds = array<i64: 8, 1>}, {pipeline_mode = #tpu.pipeline_mode<synchronous>, transform_indices = @transform_4, window_bounds = array<i64: 8, 1>}]} {
    %c0_i32 = arith.constant 0 : i32
    %0 = arith.cmpi eq, %arg0, %c0_i32 : i32
    %c0_i32_0 = arith.constant 0 : i32
    %1 = arith.cmpi eq, %arg1, %c0_i32_0 : i32
    %2 = arith.andi %0, %1 : i1
    %c1_i32 = arith.constant 1 : i32
    %3 = arith.cmpi eq, %arg0, %c1_i32 : i32
    %c0_i32_1 = arith.constant 0 : i32
    %4 = arith.cmpi eq, %arg1, %c0_i32_1 : i32
    %5 = arith.andi %3, %4 : i1
    %6 = arith.extui %2 : i1 to i32
    %c0_i32_2 = arith.constant 0 : i32
    %7 = arith.cmpi ne, %6, %c0_i32_2 : i32
    scf.if %7 {
      %cst_21 = arith.constant 0.000000e+00 : f32
      %28 = vector.broadcast %cst_21 : f32 to vector<8x1xf32>
      %c0_22 = arith.constant 0 : index
      %c0_23 = arith.constant 0 : index
      %29 = vector.load %arg7[%c0_22, %c0_23] : memref<8x1xf32, #tpu.memory_space<vmem>>, vector<8x1xf32>
      tpu.vector_store %arg7[%c0_22, %c0_23], %28 {strides = array<i32>} : memref<8x1xf32, #tpu.memory_space<vmem>>, vector<8x1xf32>,
      %cst_24 = arith.constant 0.000000e+00 : f32
      %30 = vector.broadcast %cst_24 : f32 to vector<8x1xf32>
      %c0_25 = arith.constant 0 : index
      %c0_26 = arith.constant 0 : index
      %31 = vector.load %arg8[%c0_25, %c0_26] : memref<8x1xf32, #tpu.memory_space<vmem>>, vector<8x1xf32>
      tpu.vector_store %arg8[%c0_25, %c0_26], %30 {strides = array<i32>} : memref<8x1xf32, #tpu.memory_space<vmem>>, vector<8x1xf32>,
    } else {
    }
    %c0 = arith.constant 0 : index
    %c0_3 = arith.constant 0 : index
    %8 = vector.load %arg3[%c0, %c0_3] : memref<8x12xf32, #tpu.memory_space<vmem>>, vector<8x12xf32>
    %c0_4 = arith.constant 0 : index
    %c0_5 = arith.constant 0 : index
    %c0_6 = arith.constant 0 : index
    %9 = vector.load %arg2[%c0_4, %c0_5, %c0_6] : memref<1x12x8xf32, #tpu.memory_space<vmem>>, vector<1x12x8xf32>
    %10 = vector.shape_cast %9 : vector<1x12x8xf32> to vector<12x8xf32>
    %cst = arith.constant dense<0.000000e+00> : vector<8x8xf32>
    %11 = tpu.matmul %8, %10, %cst {dimension_numbers = #tpu.dot_dimension_numbers<[1], [0], [0], [1], [0, 0, 1, 1], [], []>} : vector<8x12xf32>, vector<12x8xf32>, vector<8x8xf32> -> vector<8x8xf32>
    %c0_7 = arith.constant 0 : index
    %c0_8 = arith.constant 0 : index
    %c0_9 = arith.constant 0 : index
    %12 = vector.load %arg4[%c0_7, %c0_8, %c0_9] : memref<1x8x8xf32, #tpu.memory_space<vmem>>, vector<1x8x8xf32>
    %13 = vector.shape_cast %12 : vector<1x8x8xf32> to vector<8x8xf32>
    %14 = vector.shape_cast %11 : vector<8x8xf32> to vector<1x8x8xf32>
    tpu.vector_store %arg4[%c0_7, %c0_8, %c0_9], %14 {strides = array<i32>} : memref<1x8x8xf32, #tpu.memory_space<vmem>>, vector<1x8x8xf32>,
    %c0_10 = arith.constant 0 : index
    %c0_11 = arith.constant 0 : index
    %15 = vector.load %arg7[%c0_10, %c0_11] : memref<8x1xf32, #tpu.memory_space<vmem>>, vector<8x1xf32>
    %cst_12 = arith.constant dense<0.000000e+00> : vector<8xf32>
    %16 = vector.multi_reduction <add>, %11, %cst_12 [1] : vector<8x8xf32> to vector<8xf32>
    %17 = vector.shape_cast %16 : vector<8xf32> to vector<8x1xf32>
    %18 = arith.addf %15, %17 : vector<8x1xf32>
    %c0_13 = arith.constant 0 : index
    %c0_14 = arith.constant 0 : index
    %19 = vector.load %arg7[%c0_13, %c0_14] : memref<8x1xf32, #tpu.memory_space<vmem>>, vector<8x1xf32>
    tpu.vector_store %arg7[%c0_13, %c0_14], %18 {strides = array<i32>} : memref<8x1xf32, #tpu.memory_space<vmem>>, vector<8x1xf32>,
    %c0_15 = arith.constant 0 : index
    %c0_16 = arith.constant 0 : index
    %20 = vector.load %arg8[%c0_15, %c0_16] : memref<8x1xf32, #tpu.memory_space<vmem>>, vector<8x1xf32>
    %21 = arith.mulf %11, %11 : vector<8x8xf32>
    %cst_17 = arith.constant dense<0.000000e+00> : vector<8xf32>
    %22 = vector.multi_reduction <add>, %21, %cst_17 [1] : vector<8x8xf32> to vector<8xf32>
    %23 = vector.shape_cast %22 : vector<8xf32> to vector<8x1xf32>
    %24 = arith.addf %20, %23 : vector<8x1xf32>
    %c0_18 = arith.constant 0 : index
    %c0_19 = arith.constant 0 : index
    %25 = vector.load %arg8[%c0_18, %c0_19] : memref<8x1xf32, #tpu.memory_space<vmem>>, vector<8x1xf32>
    tpu.vector_store %arg8[%c0_18, %c0_19], %24 {strides = array<i32>} : memref<8x1xf32, #tpu.memory_space<vmem>>, vector<8x1xf32>,
    %26 = arith.extui %5 : i1 to i32
    %c0_i32_20 = arith.constant 0 : i32
    %27 = arith.cmpi ne, %26, %c0_i32_20 : i32
    scf.if %27 {
      %c0_21 = arith.constant 0 : index
      %c0_22 = arith.constant 0 : index
      %28 = vector.load %arg7[%c0_21, %c0_22] : memref<8x1xf32, #tpu.memory_space<vmem>>, vector<8x1xf32>
      %c0_23 = arith.constant 0 : index
      %c0_24 = arith.constant 0 : index
      %29 = vector.load %arg5[%c0_23, %c0_24] : memref<8x1xf32, #tpu.memory_space<vmem>>, vector<8x1xf32>
      tpu.vector_store %arg5[%c0_23, %c0_24], %28 {strides = array<i32>} : memref<8x1xf32, #tpu.memory_space<vmem>>, vector<8x1xf32>,
      %c0_25 = arith.constant 0 : index
      %c0_26 = arith.constant 0 : index
      %30 = vector.load %arg8[%c0_25, %c0_26] : memref<8x1xf32, #tpu.memory_space<vmem>>, vector<8x1xf32>
      %c0_27 = arith.constant 0 : index
      %c0_28 = arith.constant 0 : index
      %31 = vector.load %arg6[%c0_27, %c0_28] : memref<8x1xf32, #tpu.memory_space<vmem>>, vector<8x1xf32>
      tpu.vector_store %arg6[%c0_27, %c0_28], %30 {strides = array<i32>} : memref<8x1xf32, #tpu.memory_space<vmem>>, vector<8x1xf32>,
    } else {
    }
    return
  }
  func.func @transform_0(%arg0: i32, %arg1: i32) -> (i32, i32, i32) {
    %c0_i32 = arith.constant 0 : i32
    %c0_i32_0 = arith.constant 0 : i32
    return %arg0, %c0_i32, %arg1 : i32, i32, i32
  }
  func.func @transform_1(%arg0: i32, %arg1: i32) -> (i32, i32) {
    %c0_i32 = arith.constant 0 : i32
    %c0_i32_0 = arith.constant 0 : i32
    %c0_i32_1 = arith.constant 0 : i32
    return %c0_i32, %c0_i32_0 : i32, i32
  }
  func.func @transform_2(%arg0: i32, %arg1: i32) -> (i32, i32, i32) {
    %c0_i32 = arith.constant 0 : i32
    %c0_i32_0 = arith.constant 0 : i32
    return %arg0, %c0_i32, %arg1 : i32, i32, i32
  }
  func.func @transform_3(%arg0: i32, %arg1: i32) -> (i32, i32) {
    %c0_i32 = arith.constant 0 : i32
    %c0_i32_0 = arith.constant 0 : i32
    %c0_i32_1 = arith.constant 0 : i32
    return %c0_i32, %c0_i32_0 : i32, i32
  }
  func.func @transform_4(%arg0: i32, %arg1: i32) -> (i32, i32) {
    %c0_i32 = arith.constant 0 : i32
    %c0_i32_0 = arith.constant 0 : i32
    %c0_i32_1 = arith.constant 0 : i32
    return %c0_i32, %c0_i32_0 : i32, i32
  }
}

</mosaic_0001>

<llo_original>
// kernel: tpu_custom_call.1
$region0: #{tpu_custom_call.1}
  #allocation0 [shape = 'u32[]', space=smem, size = 0x4, offset = 0x4, fixed_abs, tag = 'smem constant byte address 0x4 - core index']
  #allocation1 [shape = 'u32[144,128]{1,0:T(1,128)}', space=vmem, size = 0x12000, scoped, tag = 'internal scratch']
  #allocation2 [shape = 'f32[8,1]{1,0:T(8,128)}', space=vmem, size = 0x1000, scoped, tag = 'scratch operand']
  #allocation3 [shape = 'f32[8,1]{1,0:T(8,128)}', space=vmem, size = 0x1000, scoped, tag = 'scratch operand']
  %s0 = inlined_call_operand.vmem [shape: f32[2,12,8], index: 0, kind: input, shape index: {}]
  %s1 = inlined_call_operand.vmem [shape: f32[8,12], index: 1, kind: input, shape index: {}]
  %s2 = inlined_call_operand.hbm [shape: f32[2,8,8], index: 2, kind: output, shape index: {0}]
  %s3 = inlined_call_operand.vmem [shape: f32[8,1], index: 3, kind: output, shape index: {1}]
  %s4 = inlined_call_operand.vmem [shape: f32[8,1], index: 4, kind: output, shape index: {2}]
  %5 = xla_tuple %s2, %s3, %s4
  %s6 = sld [smem:[#allocation0]]
  $region65: #{tpu_custom_call.1} parent=0
    _
  %s8 = ssub.s32 1, %s6
  %s9 = scalar_select 0, %s8, %s6
  $region1: #{tpu_custom_call.1} parent=0
    #allocation4 [shape = 'u8[8192]{0}', space=vmem, size = 0x2000, scoped, tag = 'output window, operand 0']
    #allocation5 [shape = 's32[2]{0}', space=sflag, size = 0x8, scoped, tag = 'scoped memory for tpu_custom_call.1']
    %10 = vsyncpa [#allocation5], 0
    %s11 = scalar_lea.sflag [#allocation5], 1
    %12 = vsyncpa %s11, 0
    loop: start=0, step=1, limit=4
    $region2: #{tpu_custom_call.1} parent=1 // loop_pre_header
      _
    $region3: #{tpu_custom_call.1} parent=1 // loop_header
      %s14 = sphi 0, %s18
      %p15 = scmp.ge.s32.totalorder %s14, 4
      %s21 = sphi 0, %s33
      %s22 = sphi 0, %s29
      %s23 = sphi 0, %s21
      %s24 = sphi 0, %s22
      %s25 = sphi 0, %s23
      %s26 = sphi 0, %s24
      %s38 = sphi 0, %s40
      %s41 = sphi 0, %s38
      %s42 = sphi 0, %s41
      %s58 = sphi 0, %s42
      %s62 = sphi 0, %s62
      %s64 = sphi 0, %s62
      %s65 = sphi 0, %s64
      %s79 = sphi 0, %s65
      %s87 = sphi 0, %s89
      %s90 = sphi 0, %s87
      %s91 = sphi 0, %s90
      %s107 = sphi 0, %s91
      %s111 = sphi 0, %s111
      %s113 = sphi 0, %s111
      %s114 = sphi 0, %s113
      %s128 = sphi 0, %s114
      %s132 = sphi 0, %s132
      %s134 = sphi 0, %s132
      %s135 = sphi 0, %s134
      %s149 = sphi 0, %s135
    $region4: #{tpu_custom_call.1} parent=1 // loop_header_branch
      %17 = sbr.rel (%p15) target = $region8
    $region5: #{tpu_custom_call.1} parent=1 // loop_body
      %s19 = ssub.s32 %s14, 1
      %s20 = ssub.s32 %s14, 2
      %s27 = sadd.s32 1, %s22
      %p28 = scmp.ge.s32.totalorder %s27, 1
      %s29 = scalar_select %p28, 0, %s27
      %s30 = sadd.s32 1, %s21
      %s31 = scalar_select %p28, %s30, %s21
      %p32 = scmp.ge.s32.totalorder %s31, 2
      %s33 = scalar_select %p32, 0, %s31
      %s34 = ssub.s32 %s21, %s33
      %s35 = ssub.s32 %s22, %s29
      %s36 = sor.u32 %s34, %s35
      %p37 = scmp.eq.s32.totalorder %s36, 0
      %s39 = sadd.s32 %s38, 1
      %s40 = scalar_select %p37, %s38, %s39
      %p43 = pneg %p37
      %p44 = scmp.eq.s32.totalorder %s14, 1
      %p45 = por %p43, %p44
      %p46 = scmp.ne.s32.totalorder %s38, %s41
      %p47 = scmp.eq.s32.totalorder %s14, 0
      %p48 = por %p46, %p47
      %p49 = scmp.ne.s32.totalorder %s38, %s41
      %p50 = scmp.eq.s32.totalorder %s19, 1
      %p51 = por %p49, %p50
      %p52 = scmp.ne.s32.totalorder %s41, %s42
      %p53 = scmp.eq.s32.totalorder %s19, 0
      %p54 = por %p52, %p53
      %p55 = scmp.ne.s32.totalorder %s41, %s42
      %p56 = scmp.eq.s32.totalorder %s20, 1
      %p57 = por %p55, %p56
      %p59 = scmp.ne.s32.totalorder %s42, %s58
      %p60 = scmp.eq.s32.totalorder %s20, 0
      %p61 = por %p59, %p60
      %s63 = sadd.s32 %s62, 1
      %p66 = scmp.eq.s32.totalorder %s14, 1
      %p67 = scmp.ne.s32.totalorder %s62, %s64
      %p68 = scmp.eq.s32.totalorder %s14, 0
      %p69 = por %p67, %p68
      %p70 = scmp.ne.s32.totalorder %s62, %s64
      %p71 = scmp.eq.s32.totalorder %s19, 1
      %p72 = por %p70, %p71
      %p73 = scmp.ne.s32.totalorder %s64, %s65
      %p74 = scmp.eq.s32.totalorder %s19, 0
      %p75 = por %p73, %p74
      %p76 = scmp.ne.s32.totalorder %s64, %s65
      %p77 = scmp.eq.s32.totalorder %s20, 1
      %p78 = por %p76, %p77
      %p80 = scmp.ne.s32.totalorder %s65, %s79
      %p81 = scmp.eq.s32.totalorder %s20, 0
      %p82 = por %p80, %p81
      %s83 = ssub.s32 %s21, %s33
      %s84 = ssub.s32 %s22, %s29
      %s85 = sor.u32 %s83, %s84
      %p86 = scmp.eq.s32.totalorder %s85, 0
      %s88 = sadd.s32 %s87, 1
      %s89 = scalar_select %p86, %s87, %s88
      %p92 = pneg %p86
      %p93 = scmp.eq.s32.totalorder %s14, 1
      %p94 = por %p92, %p93
      %p95 = scmp.ne.s32.totalorder %s87, %s90
      %p96 = scmp.eq.s32.totalorder %s14, 0
      %p97 = por %p95, %p96
      %p98 = scmp.ne.s32.totalorder %s87, %s90
      %p99 = scmp.eq.s32.totalorder %s19, 1
      %p100 = por %p98, %p99
      %p101 = scmp.ne.s32.totalorder %s90, %s91
      %p102 = scmp.eq.s32.totalorder %s19, 0
      %p103 = por %p101, %p102
      %p104 = scmp.ne.s32.totalorder %s90, %s91
      %p105 = scmp.eq.s32.totalorder %s20, 1
      %p106 = por %p104, %p105
      %p108 = scmp.ne.s32.totalorder %s91, %s107
      %p109 = scmp.eq.s32.totalorder %s20, 0
      %p110 = por %p108, %p109
      %s112 = sadd.s32 %s111, 1
      %p115 = scmp.eq.s32.totalorder %s14, 1
      %p116 = scmp.ne.s32.totalorder %s111, %s113
      %p117 = scmp.eq.s32.totalorder %s14, 0
      %p118 = por %p116, %p117
      %p119 = scmp.ne.s32.totalorder %s111, %s113
      %p120 = scmp.eq.s32.totalorder %s19, 1
      %p121 = por %p119, %p120
      %p122 = scmp.ne.s32.totalorder %s113, %s114
      %p123 = scmp.eq.s32.totalorder %s19, 0
      %p124 = por %p122, %p123
      %p125 = scmp.ne.s32.totalorder %s113, %s114
      %p126 = scmp.eq.s32.totalorder %s20, 1
      %p127 = por %p125, %p126
      %p129 = scmp.ne.s32.totalorder %s114, %s128
      %p130 = scmp.eq.s32.totalorder %s20, 0
      %p131 = por %p129, %p130
      %s133 = sadd.s32 %s132, 1
      %p136 = scmp.eq.s32.totalorder %s14, 1
      %p137 = scmp.ne.s32.totalorder %s132, %s134
      %p138 = scmp.eq.s32.totalorder %s14, 0
      %p139 = por %p137, %p138
      %p140 = scmp.ne.s32.totalorder %s132, %s134
      %p141 = scmp.eq.s32.totalorder %s19, 1
      %p142 = por %p140, %p141
      %p143 = scmp.ne.s32.totalorder %s134, %s135
      %p144 = scmp.eq.s32.totalorder %s19, 0
      %p145 = por %p143, %p144
      %p146 = scmp.ne.s32.totalorder %s134, %s135
      %p147 = scmp.eq.s32.totalorder %s20, 1
      %p148 = por %p146, %p147
      %p150 = scmp.ne.s32.totalorder %s135, %s149
      %p151 = scmp.eq.s32.totalorder %s20, 0
      %p152 = por %p150, %p151
      %p153 = scmp.le.s32.totalorder 1, %s14
      %p154 = scmp.lt.s32.totalorder %s14, 3
      %p155 = pnand %p153, %p154
      %p156 = pneg %p155
      // Predicated region
      $region9: #{tpu_custom_call.1} parent=5 // pred_check
        _
      $region10: #{tpu_custom_call.1} parent=5 // pred_check_branch
        %158 = sbr.rel (%p155) target = $region12
      $region11: #{tpu_custom_call.1} parent=5 // pred_region
        %s159 = ssub.s32 %s14, 1
        // Predicated region
        $region13: #{tpu_custom_call.1} parent=11 // pred_check
          %p160 = pneg %p75
        $region14: #{tpu_custom_call.1} parent=11 // pred_check_branch
          %162 = sbr.rel (%p160) target = $region16
        $region15: #{tpu_custom_call.1} parent=11 // pred_region
          _
        $region16: #{tpu_custom_call.1} parent=11 // pred_fallthru
          _
      $region12: #{tpu_custom_call.1} parent=5 // pred_fallthru
        _
      %p163 = scmp.lt.s32.totalorder %s14, 2
      // Predicated region
      $region17: #{tpu_custom_call.1} parent=5 // pred_check
        %p164 = pneg %p163
      $region18: #{tpu_custom_call.1} parent=5 // pred_check_branch
        %166 = sbr.rel (%p164) target = $region20
      $region19: #{tpu_custom_call.1} parent=5 // pred_region
        // Predicated region
        $region21: #{tpu_custom_call.1} parent=19 // pred_check
          %p167 = pneg %p48
        $region22: #{tpu_custom_call.1} parent=19 // pred_check_branch
          %169 = sbr.rel (%p167) target = $region24
        $region23: #{tpu_custom_call.1} parent=19 // pred_region
          %p170 = scmp.lt.s32.totalorder %s21, 1
          %s171 = scalar_select %p170, %s21, 1
          %p172 = scmp.lt.s32.totalorder %s22, 0
          %s173 = scalar_select %p172, %s22, 0
          %s174 = smul.addr %s171, 2
          %s175 = sadd.s32 %s173, %s174
          %s176 = smul.addr %s175, 8
          %s177 = scalar_lea.vmem %s0, %s176
        $region24: #{tpu_custom_call.1} parent=19 // pred_fallthru
          _
      $region20: #{tpu_custom_call.1} parent=5 // pred_fallthru
        _
      %p178 = scmp.le.s32.totalorder 1, %s14
      %p179 = scmp.lt.s32.totalorder %s14, 3
      %p180 = pnand %p178, %p179
      %p181 = pneg %p180
      // Predicated region
      $region25: #{tpu_custom_call.1} parent=5 // pred_check
        _
      $region26: #{tpu_custom_call.1} parent=5 // pred_check_branch
        %183 = sbr.rel (%p180) target = $region28
      $region27: #{tpu_custom_call.1} parent=5 // pred_region
        %s184 = ssub.s32 %s14, 1
        %p185 = scmp.lt.s32.totalorder %s23, 1
        %s186 = scalar_select %p185, %s23, 1
        %p187 = scmp.lt.s32.totalorder %s24, 0
        %s188 = scalar_select %p187, %s24, 0
        %s189 = smul.addr %s186, 2
        %s190 = sadd.s32 %s188, %s189
        %s191 = smul.addr %s190, 8
        %s192 = scalar_lea.vmem %s0, %s191
        %p193 = pneg %p54
        %p194 = pneg %p51
        %p195 = pneg %p75
        %p196 = pneg %p72
        %p197 = pneg %p103
        %p198 = pneg %p100
        %s199 = sand.u32 %s90, 1
        %s200 = scalar_lea.sflag [#allocation5], %s199
        %s201 = sand.u32 %s90, 1
        %s202 = smul.addr %s201, 8
        %s203 = scalar_lea.vmem [#allocation4], %s202
        %p204 = pneg %p124
        %p205 = pneg %p121
        %p206 = pneg %p145
        %p207 = pneg %p142
        %p208 = scmp.lt.s32.totalorder %s23, 1
        %s209 = scalar_select %p208, %s23, 1
        %p210 = scmp.lt.s32.totalorder %s24, 0
        %s211 = scalar_select %p210, %s24, 0
        %s212 = smul.addr %s209, 2
        %s213 = sadd.s32 %s211, %s212
        %s214 = smul.addr %s213, 8
        %s215 = scalar_lea.vmem %s0, %s214
        %p216 = scmp.eq.s32.totalorder %s23, 0
        %p217 = scmp.eq.s32.totalorder %s24, 0
        %p218 = pnand %p216, %p217
        %p219 = pneg %p218
        %p220 = scmp.eq.s32.totalorder %s23, 1
        %p221 = pnand %p220, %p217
        %p222 = pneg %p221
        // Predicated region
        $region29: #{tpu_custom_call.1} parent=27 // pred_check
          _
        $region30: #{tpu_custom_call.1} parent=27 // pred_check_branch
          %224 = sbr.rel (%p218) target = $region32
        $region31: #{tpu_custom_call.1} parent=27 // pred_region
          %vm225 = vcmask 7168
          %226 = vst.msk [vmem:[#allocation2] sm:$0xff] %vm225, 0.0
          %227 = vst.msk [vmem:[#allocation3] sm:$0xff] %vm225, 0.0
        $region32: #{tpu_custom_call.1} parent=27 // pred_fallthru
          _
        %v228 = vld [vmem:[%s1] sm:$0xff]
        %v229 = vld [vmem:[%s215] sm:$0xff]
        %v230 = vld [vmem:[%s215 + $0x8] sm:$0xf]
        %vm231 = vcmask 97280
        %v233 = vsel %vm231, %v228, 0
        %vm235 = vcmask 1043456
        %v237 = vsel %vm235, %v230, 0
        %239 = vmatprep.subr.mxu0 0.0
        %240 = vmatpush1.msra.mxu0 %v229
        %241 = vmatprep.subr.mxu0 0.0
        %242 = vmatpush1.msra.mxu0 %v237
        %243 = vmatprep.subr.mxu0 0.0
        %244 = vmatpush1.msra.mxu0 0.0
        %245 = vmatprep.subr.mxu0 0.0
        %246 = vmatpush1.msra.mxu0 0.0
        %247 = vmatprep.subr.mxu0 0.0
        %248 = vmatpush1.msra.mxu0 0.0
        %249 = vmatprep.subr.mxu0 0.0
        %250 = vmatpush1.msra.mxu0 0.0
        %251 = vmatprep.subr.mxu0 0.0
        %252 = vmatpush1.msra.mxu0 0.0
        %253 = vmatprep.subr.mxu0 0.0
        %254 = vmatpush1.msra.mxu0 0.0
        %255 = vmatprep.subr.mxu0 0.0
        %256 = vmatpush1.msra.mxu0 0.0
        %257 = vmatprep.subr.mxu0 0.0
        %258 = vmatpush1.msra.mxu0 0.0
        %259 = vmatprep.subr.mxu0 0.0
        %260 = vmatpush1.msra.mxu0 0.0
        %261 = vmatprep.subr.mxu0 0.0
        %262 = vmatpush1.msra.mxu0 0.0
        %263 = vmatprep.subr.mxu0 0.0
        %264 = vmatpush1.msra.mxu0 0.0
        %265 = vmatprep.subr.mxu0 0.0
        %266 = vmatpush1.msra.mxu0 0.0
        %267 = vmatprep.subr.mxu0 0.0
        %268 = vmatpush1.msra.mxu0 0.0
        %269 = vmatprep.subr.mxu0 0.0
        %270 = vmatpush1.msra.mxu0 0.0
        %271 = vmatprep.subr.mxu0 0.0
        %272 = vmatpush1.msra.mxu0 0.0
        %273 = vmatprep.subr.mxu0 0.0
        %274 = vmatpush1.msra.mxu0 0.0
        %275 = vmatprep.subr.mxu0 0.0
        %276 = vmatpush1.msra.mxu0 0.0
        %277 = vmatprep.subr.mxu0 0.0
        %278 = vmatpush1.msra.mxu0 0.0
        %279 = vmatprep.subr.mxu0 0.0
        %280 = vmatpush1.msra.mxu0 0.0
        %281 = vmatprep.subr.mxu0 0.0
        %282 = vmatpush1.msra.mxu0 0.0
        %283 = vmatprep.subr.mxu0 0.0
        %284 = vmatpush1.msra.mxu0 0.0
        %285 = vmatprep.subr.mxu0 0.0
        %286 = vmatpush1.msra.mxu0 0.0
        %287 = vmatprep.subr.mxu0 0.0
        %288 = vmatpush1.msra.mxu0 0.0
        %289 = vmatprep.subr.mxu0 0.0
        %290 = vmatpush1.msra.mxu0 0.0
        %291 = vmatprep.subr.mxu0 0.0
        %292 = vmatpush1.msra.mxu0 0.0
        %293 = vmatprep.subr.mxu0 0.0
        %294 = vmatpush1.msra.mxu0 0.0
        %295 = vmatprep.subr.mxu0 0.0
        %296 = vmatpush1.msra.mxu0 0.0
        %297 = vmatprep.subr.mxu0 0.0
        %298 = vmatpush1.msra.mxu0 0.0
        %299 = vmatprep.subr.mxu0 0.0
        %300 = vmatpush1.msra.mxu0 0.0
        %301 = vmatprep.subr.mxu0 0.0
        %302 = vmatpush1.msra.mxu0 0.0
        %303 = vmatprep.mubr.f32.mxu0 0.0
        %304 = vmatmul.mubr.f32.gmra.mrb[0].mxu0 %v233
        %v305 = vpop.f32.mrb[0].mxu0
        %v306 = vadd.f32 0.0, %v305
        %v307 = vpop.f32.mrb[0].mxu0
        %308 = vdwg.mxu0
        %vm309 = vcmask 64512
        %310 = vst.msk [vmem:[%s203] sm:$0xff] %vm309, %v306
        %v311 = vld [vmem:[#allocation2] sm:$0xff]
        %v312 = vsel %vm309, %v306, 0.0
        %313 = vadd.xlane.f32.xlu0 %v312
        %v314 = vpop.xlane.xlu0 %313
        %v315 = vadd.f32 %v311, %v314
        %vm316 = vcmask 7168
        %317 = vst.msk [vmem:[#allocation2] sm:$0xff] %vm316, %v315
        %v318 = vld [vmem:[#allocation3] sm:$0xff]
        %v319 = vmul.f32 %v306, %v306
        %v320 = vsel %vm309, %v319, 0.0
        %321 = vadd.xlane.f32.xlu0 %v320
        %v322 = vpop.xlane.xlu0 %321
        %v323 = vadd.f32 %v318, %v322
        %324 = vst.msk [vmem:[#allocation3] sm:$0xff] %vm316, %v323
        // Predicated region
        $region33: #{tpu_custom_call.1} parent=27 // pred_check
          _
        $region34: #{tpu_custom_call.1} parent=27 // pred_check_branch
          %326 = sbr.rel (%p221) target = $region36
        $region35: #{tpu_custom_call.1} parent=27 // pred_region
          %v327 = vld [vmem:[#allocation2] sm:$0xff]
          %328 = vst.msk [vmem:[%s3] sm:$0xff] %vm316, %v327
          %v329 = vld [vmem:[#allocation3] sm:$0xff]
          %330 = vst.msk [vmem:[%s4] sm:$0xff] %vm316, %v329
        $region36: #{tpu_custom_call.1} parent=27 // pred_fallthru
          _
        %s331 = sand.u32 %s90, 1
        %s332 = scalar_lea.sflag [#allocation5], %s331
        %s333 = sand.u32 %s90, 1
        %s334 = smul.addr %s333, 8
        %s335 = scalar_lea.vmem [#allocation4], %s334
        // Predicated region
        $region37: #{tpu_custom_call.1} parent=27 // pred_check
          %p336 = pneg %p100
        $region38: #{tpu_custom_call.1} parent=27 // pred_check_branch
          %338 = sbr.rel (%p336) target = $region40
        $region39: #{tpu_custom_call.1} parent=27 // pred_region
          %s340 = ssub.s32 128, 128
          %341 = vsyncadd %s332, %s340
          %s342 = sadd.s32 %s24, %s23
          %s343 = smul.addr %s342, 128
          %s344 = scalar_lea.hbm %s2, %s343
          %s346 = sshll.u32 %s335, 4
          %s347 = int_to_ptr.vmem [resolvable:$true] %s346
          %349 = dma.vmem_to_hbm [thread:$0]  %s347, 128, %s344, %s332
        $region40: #{tpu_custom_call.1} parent=27 // pred_fallthru
          _
        // Predicated region
        $region41: #{tpu_custom_call.1} parent=27 // pred_check
          %p350 = pneg %p121
        $region42: #{tpu_custom_call.1} parent=27 // pred_check_branch
          %352 = sbr.rel (%p350) target = $region44
        $region43: #{tpu_custom_call.1} parent=27 // pred_region
          _
        $region44: #{tpu_custom_call.1} parent=27 // pred_fallthru
          _
        // Predicated region
        $region45: #{tpu_custom_call.1} parent=27 // pred_check
          %p353 = pneg %p142
        $region46: #{tpu_custom_call.1} parent=27 // pred_check_branch
          %355 = sbr.rel (%p353) target = $region48
        $region47: #{tpu_custom_call.1} parent=27 // pred_region
          _
        $region48: #{tpu_custom_call.1} parent=27 // pred_fallthru
          _
        // Predicated region
        $region49: #{tpu_custom_call.1} parent=27 // pred_check
          %p356 = pneg %p121
        $region50: #{tpu_custom_call.1} parent=27 // pred_check_branch
          %358 = sbr.rel (%p356) target = $region52
        $region51: #{tpu_custom_call.1} parent=27 // pred_region
          _
        $region52: #{tpu_custom_call.1} parent=27 // pred_fallthru
          _
        // Predicated region
        $region53: #{tpu_custom_call.1} parent=27 // pred_check
          %p359 = pneg %p142
        $region54: #{tpu_custom_call.1} parent=27 // pred_check_branch
          %361 = sbr.rel (%p359) target = $region56
        $region55: #{tpu_custom_call.1} parent=27 // pred_region
          _
        $region56: #{tpu_custom_call.1} parent=27 // pred_fallthru
          _
      $region28: #{tpu_custom_call.1} parent=5 // pred_fallthru
        _
      %p362 = scmp.le.s32.totalorder 2, %s14
      // Predicated region
      $region57: #{tpu_custom_call.1} parent=5 // pred_check
        %p363 = pneg %p362
      $region58: #{tpu_custom_call.1} parent=5 // pred_check_branch
        %365 = sbr.rel (%p363) target = $region60
      $region59: #{tpu_custom_call.1} parent=5 // pred_region
        %s366 = ssub.s32 %s14, 2
        // Predicated region
        $region61: #{tpu_custom_call.1} parent=59 // pred_check
          %p367 = pneg %p106
        $region62: #{tpu_custom_call.1} parent=59 // pred_check_branch
          %369 = sbr.rel (%p367) target = $region64
        $region63: #{tpu_custom_call.1} parent=59 // pred_region
          %s370 = sand.u32 %s91, 1
          %s371 = scalar_lea.sflag [#allocation5], %s370
          %s372 = sand.u32 %s91, 1
          %s373 = smul.addr %s372, 8
          %s374 = scalar_lea.vmem [#allocation4], %s373
          %375 = dma.done %s371, 128
        $region64: #{tpu_custom_call.1} parent=59 // pred_fallthru
          _
      $region60: #{tpu_custom_call.1} parent=5 // pred_fallthru
        _
    $region6: #{tpu_custom_call.1} parent=1 // loop_footer
      %s18 = sadd.s32 1, %s14
    $region7: #{tpu_custom_call.1} parent=1 // loop_footer_branch
      %13 = sbr.rel target = $region3
    $region8: #{tpu_custom_call.1} parent=1 // loop_exit
      _
    %376 = vsyncpa [#allocation5], 1
    %s377 = scalar_lea.sflag [#allocation5], 1
    %378 = vsyncpa %s377, 1

</llo_original>
